<compile_context>
chip_gen: v5e
topology: v5e:2x2
jax: 0.10.0
libtpu: 0.0.40
codegen_flags: <defaults>
</compile_context>

<pallas_src>
import jax
import jax.numpy as jnp
from jax.experimental import pallas as pl
from jax.experimental.pallas import tpu as pltpu

LOG_2PI = 1.8378770664093453  # log(2 * pi)
LANES = 128                   # lane-dense padded width for params / output


def sac_kernel(x_ref, eps_ref, w1_ref, w2_ref, wh_ref, slab_ref, out_ref):
    """slab rows: 0 = b1, 1 = b2, 2 = b_heads, 3 = logstd (all padded to 128)."""
    x = x_ref[...]                                              # (TB, n_in)

    # shared trunk: fc1 -> relu -> fc2 -> relu   (MXU matmuls, f32 accum)
    h = jnp.dot(x, w1_ref[...], preferred_element_type=jnp.float32)
    h = jnp.maximum(h + slab_ref[0:1, :], 0.0)                  # (TB, 128)
    core = jnp.dot(h, w2_ref[...], preferred_element_type=jnp.float32)
    core = jnp.maximum(core + slab_ref[1:2, :], 0.0)            # (TB, 128)

    # fused heads: columns [0:n_out) = policy, n_out = q1, n_out+1 = q2
    heads = jnp.dot(core, wh_ref[...], preferred_element_type=jnp.float32)
    heads = heads + slab_ref[2:3, :]                            # (TB, 128)

    # reparameterized sample: action = policy + exp(logstd) * eps.
    # eps is zero in all padded lanes (incl. q1/q2 lanes), so exp(0)*0 == 0
    # there and the q columns pass through untouched.
    out_ref[...] = heads + jnp.exp(slab_ref[3:4, :]) * eps_ref[...]


def pack_params(p):
    """Zero-pad / fuse raw params into 4 lane-dense arrays for the kernel."""
    n_in, H = p["w1"].shape
    n_out = p["wp"].shape[1]
    assert H <= LANES and n_out + 2 <= LANES

    w1p = jnp.zeros((n_in, LANES), jnp.float32).at[:, :H].set(p["w1"])
    w2p = jnp.zeros((LANES, LANES), jnp.float32).at[:H, :H].set(p["w2"])

    whp = jnp.zeros((LANES, LANES), jnp.float32)
    whp = whp.at[:H, :n_out].set(p["wp"])
    whp = whp.at[:H, n_out:n_out + 1].set(p["wq1"].T)
    whp = whp.at[:H, n_out + 1:n_out + 2].set(p["wq2"].T)

    slab = jnp.zeros((4, LANES), jnp.float32)
    slab = slab.at[0, :H].set(p["b1"][0])
    slab = slab.at[1, :H].set(p["b2"][0])
    slab = slab.at[2, :n_out].set(p["bp"][0])
    slab = slab.at[2, n_out].set(p["bq1"][0, 0])
    slab = slab.at[2, n_out + 1].set(p["bq2"][0, 0])
    slab = slab.at[3, :n_out].set(p["logstd"][0])

    return {"w1": w1p, "w2": w2p, "wh": whp, "slab": slab,
            "n_in": n_in, "n_out": n_out, "hidden": H}


def sac_forward(x, eps, packed):
    B, n_in = x.shape
    n_out = packed["n_out"]

    # batch tiling: pad B to a multiple of 8, tile up to 512 rows per step
    B8 = -(-B // 8) * 8
    tile_b = min(B8, 512)
    Bp = -(-B8 // tile_b) * tile_b

    x_p = jnp.pad(x, ((0, Bp - B), (0, 0)))
    eps_p = jnp.pad(eps, ((0, Bp - B), (0, LANES - n_out)))

    out = pl.pallas_call(
        sac_kernel,
        out_shape=jax.ShapeDtypeStruct((Bp, LANES), jnp.float32),
        grid_spec=pltpu.PrefetchScalarGridSpec(
            num_scalar_prefetch=0,
            grid=(Bp // tile_b,),
            in_specs=[
                pl.BlockSpec((tile_b, n_in), lambda i: (i, 0)),   # x
                pl.BlockSpec((tile_b, LANES), lambda i: (i, 0)),  # eps (padded)
                pl.BlockSpec((n_in, LANES), lambda i: (0, 0)),    # w1
                pl.BlockSpec((LANES, LANES), lambda i: (0, 0)),   # w2
                pl.BlockSpec((LANES, LANES), lambda i: (0, 0)),   # fused heads
                pl.BlockSpec((4, LANES), lambda i: (0, 0)),       # bias/logstd slab
            ],
            out_specs=pl.BlockSpec((tile_b, LANES), lambda i: (i, 0)),
        ),
        compiler_params=pltpu.CompilerParams(
            dimension_semantics=("parallel",)),
    )(x_p, eps_p, packed["w1"], packed["w2"], packed["wh"], packed["slab"])

    action = out[:B, :n_out]
    q1 = out[:B, n_out:n_out + 1]
    q2 = out[:B, n_out + 1:n_out + 2]

    # log_prob(action).sum() and entropy depend only on eps / logstd, never on
    # a matmul result, so (per perf review) they are computed outside the
    # kernel.  (action - policy)/std == eps exactly.
    logstd = packed["slab"][3:4, :n_out]                         # (1, n_out)
    logp = jnp.sum(-0.5 * eps * eps - logstd - 0.5 * LOG_2PI)    # scalar
    ent = jnp.broadcast_to(0.5 + 0.5 * LOG_2PI + logstd, (B, n_out))

    return action, logp, ent, q1, q2


def make_params(key, n_inputs, n_outputs, hidden):
    ks = jax.random.split(key, 10)
    scale = 0.1
    return {
        # weights stored (in, out) == torch weight.T
        "w1": scale * jax.random.normal(ks[0], (n_inputs, hidden), jnp.float32),
        "b1": scale * jax.random.normal(ks[1], (1, hidden), jnp.float32),
        "w2": scale * jax.random.normal(ks[2], (hidden, hidden), jnp.float32),
        "b2": scale * jax.random.normal(ks[3], (1, hidden), jnp.float32),
        "wp": scale * jax.random.normal(ks[4], (hidden, n_outputs), jnp.float32),
        "bp": scale * jax.random.normal(ks[5], (1, n_outputs), jnp.float32),
        # value heads kept as row vectors (1, hidden)
        "wq1": scale * jax.random.normal(ks[6], (1, hidden), jnp.float32),
        "bq1": scale * jax.random.normal(ks[7], (1, 1), jnp.float32),
        "wq2": scale * jax.random.normal(ks[8], (1, hidden), jnp.float32),
        "bq2": scale * jax.random.normal(ks[9], (1, 1), jnp.float32),
        "logstd": jnp.zeros((1, n_outputs), jnp.float32),  # nn.Parameter(zeros)
    }


def reference_forward(x, eps, p):
    h = jnp.maximum(x @ p["w1"] + p["b1"], 0.0)
    core = jnp.maximum(h @ p["w2"] + p["b2"], 0.0)
    policy = core @ p["wp"] + p["bp"]
    std = jnp.exp(p["logstd"])
    action = policy + std * eps
    logp = jnp.sum(-0.5 * eps * eps - p["logstd"] - 0.5 * LOG_2PI)
    ent = jnp.broadcast_to(0.5 + 0.5 * LOG_2PI + p["logstd"], policy.shape)
    q1 = core @ p["wq1"].T + p["bq1"]
    q2 = core @ p["wq2"].T + p["bq2"]
    return action, logp, ent, q1, q2


if __name__ == "__main__":
    B, N_IN, N_OUT, HIDDEN = 8, 16, 8, 32

    key = jax.random.PRNGKey(0)
    k_x, k_eps, k_p = jax.random.split(key, 3)

    x = jax.random.normal(k_x, (B, N_IN), jnp.float32)
    eps = jax.random.normal(k_eps, (B, N_OUT), jnp.float32)  # Normal.sample() noise
    params = make_params(k_p, N_IN, N_OUT, HIDDEN)
    packed = pack_params(params)

    outs = sac_forward(x, eps, packed)
    outs = jax.block_until_ready(outs)

    refs = reference_forward(x, eps, params)
    for o, r in zip(outs, refs):
        assert jnp.allclose(o, r, atol=1e-5, rtol=1e-5), "mismatch vs reference"

    print("KERNEL_OK")
</pallas_src>

<mosaic_0001>
module attributes {stable_mosaic.version = 11 : i64} {
  func.func @sac_kernel(%arg0: i32, %arg1: memref<8x16xf32, #tpu.memory_space<vmem>>, %arg2: memref<8x128xf32, #tpu.memory_space<vmem>>, %arg3: memref<16x128xf32, #tpu.memory_space<vmem>>, %arg4: memref<128x128xf32, #tpu.memory_space<vmem>>, %arg5: memref<128x128xf32, #tpu.memory_space<vmem>>, %arg6: memref<4x128xf32, #tpu.memory_space<vmem>>, %arg7: memref<8x128xf32, #tpu.memory_space<vmem>>) attributes {dimension_semantics = [#tpu.dimension_semantics<parallel>], iteration_bounds = array<i64: 1>, scalar_prefetch = 0 : i64, scratch_operands = 0 : i64, tpu.core_type = #tpu.core_type<tc>, window_params = [{transform_indices = @transform_0, window_bounds = array<i64: 8, 16>}, {transform_indices = @transform_1, window_bounds = array<i64: 8, 128>}, {pipeline_mode = #tpu.pipeline_mode<synchronous>, transform_indices = @transform_2, window_bounds = array<i64: 16, 128>}, {pipeline_mode = #tpu.pipeline_mode<synchronous>, transform_indices = @transform_3, window_bounds = array<i64: 128, 128>}, {pipeline_mode = #tpu.pipeline_mode<synchronous>, transform_indices = @transform_4, window_bounds = array<i64: 128, 128>}, {pipeline_mode = #tpu.pipeline_mode<synchronous>, transform_indices = @transform_5, window_bounds = array<i64: 4, 128>}, {transform_indices = @transform_6, window_bounds = array<i64: 8, 128>}]} {
    %c0 = arith.constant 0 : index
    %c0_0 = arith.constant 0 : index
    %0 = vector.load %arg1[%c0, %c0_0] : memref<8x16xf32, #tpu.memory_space<vmem>>, vector<8x16xf32>
    %c0_1 = arith.constant 0 : index
    %c0_2 = arith.constant 0 : index
    %1 = vector.load %arg3[%c0_1, %c0_2] : memref<16x128xf32, #tpu.memory_space<vmem>>, vector<16x128xf32>
    %cst = arith.constant dense<0.000000e+00> : vector<8x128xf32>
    %2 = tpu.matmul %0, %1, %cst {dimension_numbers = #tpu.dot_dimension_numbers<[1], [0], [0], [1], [0, 0, 1, 1], [], []>} : vector<8x16xf32>, vector<16x128xf32>, vector<8x128xf32> -> vector<8x128xf32>
    %c0_3 = arith.constant 0 : index
    %c0_4 = arith.constant 0 : index
    %3 = vector.load %arg6[%c0_3, %c0_4] : memref<4x128xf32, #tpu.memory_space<vmem>>, vector<1x128xf32>
    %4 = vector.broadcast %3 : vector<1x128xf32> to vector<8x128xf32>
    %5 = arith.addf %2, %4 : vector<8x128xf32>
    %cst_5 = arith.constant 0.000000e+00 : f32
    %6 = vector.broadcast %cst_5 : f32 to vector<8x128xf32>
    %7 = arith.maximumf %5, %6 : vector<8x128xf32>
    %c0_6 = arith.constant 0 : index
    %c0_7 = arith.constant 0 : index
    %8 = vector.load %arg4[%c0_6, %c0_7] : memref<128x128xf32, #tpu.memory_space<vmem>>, vector<128x128xf32>
    %cst_8 = arith.constant dense<0.000000e+00> : vector<8x128xf32>
    %9 = tpu.matmul %7, %8, %cst_8 {dimension_numbers = #tpu.dot_dimension_numbers<[1], [0], [0], [1], [0, 0, 1, 1], [], []>} : vector<8x128xf32>, vector<128x128xf32>, vector<8x128xf32> -> vector<8x128xf32>
    %c1 = arith.constant 1 : index
    %c0_9 = arith.constant 0 : index
    %10 = vector.load %arg6[%c1, %c0_9] : memref<4x128xf32, #tpu.memory_space<vmem>>, vector<1x128xf32>
    %11 = vector.broadcast %10 : vector<1x128xf32> to vector<8x128xf32>
    %12 = arith.addf %9, %11 : vector<8x128xf32>
    %cst_10 = arith.constant 0.000000e+00 : f32
    %13 = vector.broadcast %cst_10 : f32 to vector<8x128xf32>
    %14 = arith.maximumf %12, %13 : vector<8x128xf32>
    %c0_11 = arith.constant 0 : index
    %c0_12 = arith.constant 0 : index
    %15 = vector.load %arg5[%c0_11, %c0_12] : memref<128x128xf32, #tpu.memory_space<vmem>>, vector<128x128xf32>
    %cst_13 = arith.constant dense<0.000000e+00> : vector<8x128xf32>
    %16 = tpu.matmul %14, %15, %cst_13 {dimension_numbers = #tpu.dot_dimension_numbers<[1], [0], [0], [1], [0, 0, 1, 1], [], []>} : vector<8x128xf32>, vector<128x128xf32>, vector<8x128xf32> -> vector<8x128xf32>
    %c2 = arith.constant 2 : index
    %c0_14 = arith.constant 0 : index
    %17 = vector.load %arg6[%c2, %c0_14] : memref<4x128xf32, #tpu.memory_space<vmem>>, vector<1x128xf32>
    %18 = vector.broadcast %17 : vector<1x128xf32> to vector<8x128xf32>
    %19 = arith.addf %16, %18 : vector<8x128xf32>
    %c3 = arith.constant 3 : index
    %c0_15 = arith.constant 0 : index
    %20 = vector.load %arg6[%c3, %c0_15] : memref<4x128xf32, #tpu.memory_space<vmem>>, vector<1x128xf32>
    %21 = math.exp %20 : vector<1x128xf32>
    %c0_16 = arith.constant 0 : index
    %c0_17 = arith.constant 0 : index
    %22 = vector.load %arg2[%c0_16, %c0_17] : memref<8x128xf32, #tpu.memory_space<vmem>>, vector<8x128xf32>
    %23 = vector.broadcast %21 : vector<1x128xf32> to vector<8x128xf32>
    %24 = arith.mulf %23, %22 : vector<8x128xf32>
    %25 = arith.addf %19, %24 : vector<8x128xf32>
    %c0_18 = arith.constant 0 : index
    %c0_19 = arith.constant 0 : index
    %26 = vector.load %arg7[%c0_18, %c0_19] : memref<8x128xf32, #tpu.memory_space<vmem>>, vector<8x128xf32>
    tpu.vector_store %arg7[%c0_18, %c0_19], %25 {strides = array<i32>} : memref<8x128xf32, #tpu.memory_space<vmem>>, vector<8x128xf32>,
    return
  }
  func.func @transform_0(%arg0: i32) -> (i32, i32) {
    %c0_i32 = arith.constant 0 : i32
    %c0_i32_0 = arith.constant 0 : i32
    return %arg0, %c0_i32 : i32, i32
  }
  func.func @transform_1(%arg0: i32) -> (i32, i32) {
    %c0_i32 = arith.constant 0 : i32
    %c0_i32_0 = arith.constant 0 : i32
    return %arg0, %c0_i32 : i32, i32
  }
  func.func @transform_2(%arg0: i32) -> (i32, i32) {
    %c0_i32 = arith.constant 0 : i32
    %c0_i32_0 = arith.constant 0 : i32
    %c0_i32_1 = arith.constant 0 : i32
    return %c0_i32, %c0_i32_0 : i32, i32
  }
  func.func @transform_3(%arg0: i32) -> (i32, i32) {
    %c0_i32 = arith.constant 0 : i32
    %c0_i32_0 = arith.constant 0 : i32
    %c0_i32_1 = arith.constant 0 : i32
    return %c0_i32, %c0_i32_0 : i32, i32
  }
  func.func @transform_4(%arg0: i32) -> (i32, i32) {
    %c0_i32 = arith.constant 0 : i32
    %c0_i32_0 = arith.constant 0 : i32
    %c0_i32_1 = arith.constant 0 : i32
    return %c0_i32, %c0_i32_0 : i32, i32
  }
  func.func @transform_5(%arg0: i32) -> (i32, i32) {
    %c0_i32 = arith.constant 0 : i32
    %c0_i32_0 = arith.constant 0 : i32
    %c0_i32_1 = arith.constant 0 : i32
    return %c0_i32, %c0_i32_0 : i32, i32
  }
  func.func @transform_6(%arg0: i32) -> (i32, i32) {
    %c0_i32 = arith.constant 0 : i32
    %c0_i32_0 = arith.constant 0 : i32
    return %arg0, %c0_i32 : i32, i32
  }
}

</mosaic_0001>

<llo_original>
// kernel: tpu_custom_call.1
$region0: #{tpu_custom_call.1}
  #allocation0 [shape = 'u32[]', space=smem, size = 0x4, offset = 0x4, fixed_abs, tag = 'smem constant byte address 0x4 - core index']
  #allocation1 [shape = 'u32[72,128]{1,0:T(1,128)}', space=vmem, size = 0x9000, scoped, tag = 'internal scratch']
  %s0 = inlined_call_operand.hbm [shape: f32[8,16], index: 0, kind: input, shape index: {}]
  %s1 = inlined_call_operand.hbm [shape: f32[8,128], index: 1, kind: input, shape index: {}]
  %s2 = inlined_call_operand.hbm [shape: f32[16,128], index: 2, kind: input, shape index: {}]
  %s3 = inlined_call_operand.hbm [shape: f32[128,128], index: 3, kind: input, shape index: {}]
  %s4 = inlined_call_operand.hbm [shape: f32[128,128], index: 4, kind: input, shape index: {}]
  %s5 = inlined_call_operand.vmem [shape: f32[4,128], index: 5, kind: input, shape index: {}]
  %s6 = inlined_call_operand.hbm [shape: f32[8,128], index: 6, kind: output, shape index: {}]
  %s7 = sld [smem:[#allocation0]]
  $region54: #{tpu_custom_call.1} parent=0
    _
  %s9 = ssub.s32 1, %s7
  %s10 = scalar_select 0, %s9, %s7
  $region1: #{tpu_custom_call.1} parent=0
    #allocation2 [shape = 'u8[4096]{0}', space=vmem, size = 0x1000, scoped, tag = 'input window, operand 0, single buffered']
    #allocation3 [shape = 's32[1]{0}', space=sflag, size = 0x4, scoped, tag = 'scoped memory for tpu_custom_call.1']
    #allocation4 [shape = 's32[1]{0}', space=sflag, size = 0x4, scoped, tag = 'scoped memory for tpu_custom_call.1']
    #allocation5 [shape = 'u8[4096]{0}', space=vmem, size = 0x1000, scoped, tag = 'input window, operand 1, single buffered']
    #allocation6 [shape = 's32[1]{0}', space=sflag, size = 0x4, scoped, tag = 'scoped memory for tpu_custom_call.1']
    #allocation7 [shape = 'u8[8192]{0}', space=vmem, size = 0x2000, scoped, tag = 'input window, operand 2, single buffered']
    #allocation8 [shape = 'u8[65536]{0}', space=vmem, size = 0x10000, scoped, tag = 'input window, operand 3, single buffered']
    #allocation9 [shape = 's32[1]{0}', space=sflag, size = 0x4, scoped, tag = 'scoped memory for tpu_custom_call.1']
    #allocation10 [shape = 'u8[65536]{0}', space=vmem, size = 0x10000, scoped, tag = 'input window, operand 4, single buffered']
    #allocation11 [shape = 'u8[4096]{0}', space=vmem, size = 0x1000, scoped, tag = 'output window, operand 0, single buffered']
    %11 = vsyncpa [#allocation3], 0
    %12 = vsyncpa [#allocation6], 0
    %13 = vsyncpa [#allocation9], 0
    %14 = vsyncpa [#allocation4], 0
    // Predicated region
    $region2: #{tpu_custom_call.1} parent=1 // pred_check
      _
    $region3: #{tpu_custom_call.1} parent=1 // pred_check_branch
      %16 = sbr.rel (0) target = $region5
    $region4: #{tpu_custom_call.1} parent=1 // pred_region
      %18 = vsyncadd [#allocation3], 0
      %s20 = sshll.u32 %s0, 4
      %s21 = int_to_ptr.hbm [resolvable:$true] %s20
      %s22 = sshll.u32 [#allocation2], 4
      %s23 = int_to_ptr.vmem [resolvable:$true] %s22
      %25 = dma.hbm_to_vmem [thread:$0]  %s21, 128, %s23, [#allocation3]
    $region5: #{tpu_custom_call.1} parent=1 // pred_fallthru
      _
    // Predicated region
    $region6: #{tpu_custom_call.1} parent=1 // pred_check
      _
    $region7: #{tpu_custom_call.1} parent=1 // pred_check_branch
      %27 = sbr.rel (0) target = $region9
    $region8: #{tpu_custom_call.1} parent=1 // pred_region
      %29 = vsyncadd [#allocation6], 0
      %s31 = sshll.u32 %s1, 4
      %s32 = int_to_ptr.hbm [resolvable:$true] %s31
      %s33 = sshll.u32 [#allocation5], 4
      %s34 = int_to_ptr.vmem [resolvable:$true] %s33
      %36 = dma.hbm_to_vmem [thread:$0]  %s32, 128, %s34, [#allocation6]
    $region9: #{tpu_custom_call.1} parent=1 // pred_fallthru
      _
    // Predicated region
    $region10: #{tpu_custom_call.1} parent=1 // pred_check
      _
    $region11: #{tpu_custom_call.1} parent=1 // pred_check_branch
      %38 = sbr.rel (0) target = $region13
    $region12: #{tpu_custom_call.1} parent=1 // pred_region
      %40 = vsyncadd [#allocation6], 0
      %s41 = sshll.u32 %s2, 4
      %s42 = int_to_ptr.hbm [resolvable:$true] %s41
      %s43 = sshll.u32 [#allocation7], 4
      %s44 = int_to_ptr.vmem [resolvable:$true] %s43
      %49 = dma.hbm_to_vmem [thread:$0]  %s42, 256, %s44, [#allocation6], 128, 128, 8
    $region13: #{tpu_custom_call.1} parent=1 // pred_fallthru
      _
    // Predicated region
    $region14: #{tpu_custom_call.1} parent=1 // pred_check
      _
    $region15: #{tpu_custom_call.1} parent=1 // pred_check_branch
      %51 = sbr.rel (0) target = $region17
    $region16: #{tpu_custom_call.1} parent=1 // pred_region
      %53 = vsyncadd [#allocation9], 0
      %s54 = sshll.u32 %s3, 4
      %s55 = int_to_ptr.hbm [resolvable:$true] %s54
      %s56 = sshll.u32 [#allocation8], 4
      %s57 = int_to_ptr.vmem [resolvable:$true] %s56
      %62 = dma.hbm_to_vmem [thread:$0]  %s55, 2048, %s57, [#allocation9], 128, 128, 8
    $region17: #{tpu_custom_call.1} parent=1 // pred_fallthru
      _
    // Predicated region
    $region18: #{tpu_custom_call.1} parent=1 // pred_check
      _
    $region19: #{tpu_custom_call.1} parent=1 // pred_check_branch
      %64 = sbr.rel (0) target = $region21
    $region20: #{tpu_custom_call.1} parent=1 // pred_region
      %66 = vsyncadd [#allocation9], 0
      %s67 = sshll.u32 %s4, 4
      %s68 = int_to_ptr.hbm [resolvable:$true] %s67
      %s69 = sshll.u32 [#allocation10], 4
      %s70 = int_to_ptr.vmem [resolvable:$true] %s69
      %75 = dma.hbm_to_vmem [thread:$0]  %s68, 2048, %s70, [#allocation9], 128, 128, 8
    $region21: #{tpu_custom_call.1} parent=1 // pred_fallthru
      _
    // Predicated region
    $region22: #{tpu_custom_call.1} parent=1 // pred_check
      _
    $region23: #{tpu_custom_call.1} parent=1 // pred_check_branch
      %77 = sbr.rel (0) target = $region25
    $region24: #{tpu_custom_call.1} parent=1 // pred_region
      _
    $region25: #{tpu_custom_call.1} parent=1 // pred_fallthru
      _
    // Predicated region
    $region26: #{tpu_custom_call.1} parent=1 // pred_check
      _
    $region27: #{tpu_custom_call.1} parent=1 // pred_check_branch
      %79 = sbr.rel (0) target = $region29
    $region28: #{tpu_custom_call.1} parent=1 // pred_region
      %81 = dma.done [#allocation3], 128
    $region29: #{tpu_custom_call.1} parent=1 // pred_fallthru
      _
    // Predicated region
    $region30: #{tpu_custom_call.1} parent=1 // pred_check
      _
    $region31: #{tpu_custom_call.1} parent=1 // pred_check_branch
      %83 = sbr.rel (0) target = $region33
    $region32: #{tpu_custom_call.1} parent=1 // pred_region
      %85 = dma.done [#allocation6], 128
    $region33: #{tpu_custom_call.1} parent=1 // pred_fallthru
      _
    // Predicated region
    $region34: #{tpu_custom_call.1} parent=1 // pred_check
      _
    $region35: #{tpu_custom_call.1} parent=1 // pred_check_branch
      %87 = sbr.rel (0) target = $region37
    $region36: #{tpu_custom_call.1} parent=1 // pred_region
      %89 = dma.done [#allocation6], 256
    $region37: #{tpu_custom_call.1} parent=1 // pred_fallthru
      _
    // Predicated region
    $region38: #{tpu_custom_call.1} parent=1 // pred_check
      _
    $region39: #{tpu_custom_call.1} parent=1 // pred_check_branch
      %91 = sbr.rel (0) target = $region41
    $region40: #{tpu_custom_call.1} parent=1 // pred_region
      %93 = dma.done [#allocation9], 2048
    $region41: #{tpu_custom_call.1} parent=1 // pred_fallthru
      _
    // Predicated region
    $region42: #{tpu_custom_call.1} parent=1 // pred_check
      _
    $region43: #{tpu_custom_call.1} parent=1 // pred_check_branch
      %95 = sbr.rel (0) target = $region45
    $region44: #{tpu_custom_call.1} parent=1 // pred_region
      %97 = dma.done [#allocation9], 2048
    $region45: #{tpu_custom_call.1} parent=1 // pred_fallthru
      _
    %v98 = vld [vmem:[#allocation2] sm:$0xff]
    %v99 = vld [vmem:[#allocation7] sm:$0xff]
    %v100 = vld [vmem:[#allocation7 + $0x8] sm:$0xff]
    %v101 = vld [vmem:[%s5] sm:$0x1]
    %v102 = vperm.slane %v101, 0
    %vm103 = vcmask 130048
    %v105 = vsel %vm103, %v98, 0
    %107 = vmatpush.msra.mxu0 0.0
    %108 = vmatpush.msra.mxu0 0.0
    %109 = vmatpush.msra.mxu0 0.0
    %110 = vmatpush.msra.mxu0 0.0
    %111 = vmatpush.msra.mxu0 0.0
    %112 = vmatpush.msra.mxu0 0.0
    %113 = vmatpush.msra.mxu0 0.0
    %114 = vmatpush.msra.mxu0 0.0
    %115 = vmatpush.msra.mxu0 0.0
    %116 = vmatpush.msra.mxu0 0.0
    %117 = vmatpush.msra.mxu0 0.0
    %118 = vmatpush.msra.mxu0 0.0
    %119 = vmatpush.msra.mxu0 0.0
    %120 = vmatpush.msra.mxu0 0.0
    %121 = vmatpush.msra.mxu0 %v100
    %122 = vmatpush.msra.mxu0 %v99
    %123 = vmatmul.f32.gmra.mxu0 %v105
    %v124 = vpop.f32.mrf.mxu0
    %v125 = vadd.f32 %v102, %v124
    %126 = vdwg.mxu0
    %v127 = vmax.f32 %v125, 0.0
    %v128 = vld [vmem:[#allocation8] sm:$0xff]
    %v129 = vld [vmem:[#allocation8 + $0x8] sm:$0xff]
    %v130 = vld [vmem:[#allocation8 + $0x10] sm:$0xff]
    %v131 = vld [vmem:[#allocation8 + $0x18] sm:$0xff]
    %v132 = vld [vmem:[#allocation8 + $0x20] sm:$0xff]
    %v133 = vld [vmem:[#allocation8 + $0x28] sm:$0xff]
    %v134 = vld [vmem:[#allocation8 + $0x30] sm:$0xff]
    %v135 = vld [vmem:[#allocation8 + $0x38] sm:$0xff]
    %v136 = vld [vmem:[#allocation8 + $0x40] sm:$0xff]
    %v137 = vld [vmem:[#allocation8 + $0x48] sm:$0xff]
    %v138 = vld [vmem:[#allocation8 + $0x50] sm:$0xff]
    %v139 = vld [vmem:[#allocation8 + $0x58] sm:$0xff]
    %v140 = vld [vmem:[#allocation8 + $0x60] sm:$0xff]
    %v141 = vld [vmem:[#allocation8 + $0x68] sm:$0xff]
    %v142 = vld [vmem:[#allocation8 + $0x70] sm:$0xff]
    %v143 = vld [vmem:[#allocation8 + $0x78] sm:$0xff]
    %v144 = vld [vmem:[%s5 + $0x1] sm:$0x1]
    %v145 = vperm.slane %v144, 0
    %146 = vmatpush.msra.mxu0 %v143
    %147 = vmatpush.msra.mxu0 %v142
    %148 = vmatpush.msra.mxu0 %v141
    %149 = vmatpush.msra.mxu0 %v140
    %150 = vmatpush.msra.mxu0 %v139
    %151 = vmatpush.msra.mxu0 %v138
    %152 = vmatpush.msra.mxu0 %v137
    %153 = vmatpush.msra.mxu0 %v136
    %154 = vmatpush.msra.mxu0 %v135
    %155 = vmatpush.msra.mxu0 %v134
    %156 = vmatpush.msra.mxu0 %v133
    %157 = vmatpush.msra.mxu0 %v132
    %158 = vmatpush.msra.mxu0 %v131
    %159 = vmatpush.msra.mxu0 %v130
    %160 = vmatpush.msra.mxu0 %v129
    %161 = vmatpush.msra.mxu0 %v128
    %162 = vmatmul.f32.gmra.mxu0 %v127
    %v163 = vpop.f32.mrf.mxu0
    %v164 = vadd.f32 %v145, %v163
    %165 = vdwg.mxu0
    %v166 = vmax.f32 %v164, 0.0
    %v167 = vld [vmem:[#allocation10] sm:$0xff]
    %v168 = vld [vmem:[#allocation10 + $0x8] sm:$0xff]
    %v169 = vld [vmem:[#allocation10 + $0x10] sm:$0xff]
    %v170 = vld [vmem:[#allocation10 + $0x18] sm:$0xff]
    %v171 = vld [vmem:[#allocation10 + $0x20] sm:$0xff]
    %v172 = vld [vmem:[#allocation10 + $0x28] sm:$0xff]
    %v173 = vld [vmem:[#allocation10 + $0x30] sm:$0xff]
    %v174 = vld [vmem:[#allocation10 + $0x38] sm:$0xff]
    %v175 = vld [vmem:[#allocation10 + $0x40] sm:$0xff]
    %v176 = vld [vmem:[#allocation10 + $0x48] sm:$0xff]
    %v177 = vld [vmem:[#allocation10 + $0x50] sm:$0xff]
    %v178 = vld [vmem:[#allocation10 + $0x58] sm:$0xff]
    %v179 = vld [vmem:[#allocation10 + $0x60] sm:$0xff]
    %v180 = vld [vmem:[#allocation10 + $0x68] sm:$0xff]
    %v181 = vld [vmem:[#allocation10 + $0x70] sm:$0xff]
    %v182 = vld [vmem:[#allocation10 + $0x78] sm:$0xff]
    %v183 = vld [vmem:[%s5 + $0x2] sm:$0x1]
    %v184 = vperm.slane %v183, 0
    %185 = vmatpush.msra.mxu0 %v182
    %186 = vmatpush.msra.mxu0 %v181
    %187 = vmatpush.msra.mxu0 %v180
    %188 = vmatpush.msra.mxu0 %v179
    %189 = vmatpush.msra.mxu0 %v178
    %190 = vmatpush.msra.mxu0 %v177
    %191 = vmatpush.msra.mxu0 %v176
    %192 = vmatpush.msra.mxu0 %v175
    %193 = vmatpush.msra.mxu0 %v174
    %194 = vmatpush.msra.mxu0 %v173
    %195 = vmatpush.msra.mxu0 %v172
    %196 = vmatpush.msra.mxu0 %v171
    %197 = vmatpush.msra.mxu0 %v170
    %198 = vmatpush.msra.mxu0 %v169
    %199 = vmatpush.msra.mxu0 %v168
    %200 = vmatpush.msra.mxu0 %v167
    %201 = vmatmul.f32.gmra.mxu0 %v166
    %v202 = vpop.f32.mrf.mxu0
    %v203 = vadd.f32 %v184, %v202
    %204 = vdwg.mxu0
    %v205 = vld [vmem:[%s5 + $0x3] sm:$0x1]
    %v206 = vmul.f32 %v205, 1.442695
    %v207 = vpow.pop %v206
    %v208 = vld [vmem:[#allocation5] sm:$0xff]
    %v209 = vperm.slane %v207, 0
    %v210 = vmul.f32 %v209, %v208
    %v211 = vadd.f32 %v203, %v210
    %212 = vst [vmem:[#allocation11] sm:$0xff] %v211
    // Predicated region
    $region46: #{tpu_custom_call.1} parent=1 // pred_check
      _
    $region47: #{tpu_custom_call.1} parent=1 // pred_check_branch
      %214 = sbr.rel (0) target = $region49
    $region48: #{tpu_custom_call.1} parent=1 // pred_region
      %216 = vsyncadd [#allocation4], 0
      %s218 = sshll.u32 [#allocation11], 4
      %s219 = int_to_ptr.vmem [resolvable:$true] %s218
      %s220 = sshll.u32 %s6, 4
      %s221 = int_to_ptr.hbm [resolvable:$true] %s220
      %223 = dma.vmem_to_hbm [thread:$0]  %s219, 128, %s221, [#allocation4]
    $region49: #{tpu_custom_call.1} parent=1 // pred_fallthru
      _
    // Predicated region
    $region50: #{tpu_custom_call.1} parent=1 // pred_check
      _
    $region51: #{tpu_custom_call.1} parent=1 // pred_check_branch
      %225 = sbr.rel (0) target = $region53
    $region52: #{tpu_custom_call.1} parent=1 // pred_region
      %227 = dma.done [#allocation4], 128
    $region53: #{tpu_custom_call.1} parent=1 // pred_fallthru
      _
    %228 = vsyncpa [#allocation3], 1
    %229 = vsyncpa [#allocation6], 1
    %230 = vsyncpa [#allocation9], 1
    %231 = vsyncpa [#allocation4], 1

</llo_original>
